<compile_context>
chip_gen: v6e
topology: v6e:2x2x1
jax: 0.10.0
libtpu: 0.0.40
codegen_flags: <defaults>
</compile_context>

<pallas_src>
import jax
import jax.numpy as jnp
from jax.experimental import pallas as pl
from jax.experimental.pallas import tpu as pltpu

D_in, D_out = 25, 25
Hidden_1, Hidden_2, Hidden_3 = 50, 40, 30

# (in, out) dims of the 9 linear layers, in forward order (matches the PyTorch module).
LAYER_DIMS = [
    (D_in, Hidden_1),      # LI
    (Hidden_1, Hidden_2),  # L1
    (Hidden_2, Hidden_2),  # L2
    (Hidden_2, Hidden_2),  # L3
    (Hidden_2, Hidden_2),  # L4
    (Hidden_2, Hidden_2),  # L5
    (Hidden_2, Hidden_2),  # L6
    (Hidden_2, Hidden_3),  # L7
    (Hidden_3, D_out),     # LF
]

_PACK_ROWS = 32  # D_in rows of W_eff + 1 bias row, padded to a multiple of 8 sublanes.


def affine_kernel(wb_ref, x_ref, o_ref):
    """o = x @ W_eff + b_eff.  wb_ref packs W_eff in rows [0:D_in] and b_eff in row D_in."""
    w = wb_ref[0:D_in, :]            # (D_in, D_out)  static slice of the packed block
    b = wb_ref[D_in:D_in + 1, :]     # (1, D_out)
    y = jnp.dot(x_ref[...], w, preferred_element_type=jnp.float32) + b
    o_ref[...] = y.astype(o_ref.dtype)


def fold_params(params):
    """Collapse the activation-free linear stack into a single affine map (exact algebra)."""
    w_eff, b_eff = params[0]
    for w, b in params[1:]:
        w_eff = jnp.dot(w_eff, w, precision=jax.lax.Precision.HIGHEST)
        b_eff = jnp.dot(b_eff, w, precision=jax.lax.Precision.HIGHEST) + b
    return w_eff, b_eff  # (D_in, D_out), (1, D_out)


def mlp_forward(x, params):
    """x: (B, D_in) f32.  params: list of (w, b), w: (in, out), b: (1, out)."""
    B = x.shape[0]

    # Trace-time fold + pack (plain XLA ops, fused under jit; runs once per compile /
    # once per param set, not per kernel grid step).
    w_eff, b_eff = fold_params(params)
    wb = jnp.zeros((_PACK_ROWS, D_out), jnp.float32)
    wb = wb.at[:D_in, :].set(w_eff).at[D_in, :].set(b_eff[0])

    # Batch tiling: full batch as a single block for small/medium B (block == full dim is
    # always legal); 512-row tiles for large batches (>=85% of HBM roofline per guidance).
    bb = B if B <= 1024 else 512
    grid = (pl.cdiv(B, bb),)

    return pl.pallas_call(
        affine_kernel,
        out_shape=jax.ShapeDtypeStruct((B, D_out), jnp.float32),
        grid=grid,
        in_specs=[
            # Packed params: constant index_map -> DMA'd once, VMEM-resident across tiles.
            pl.BlockSpec((_PACK_ROWS, D_out), lambda i: (0, 0)),
            pl.BlockSpec((bb, D_in), lambda i: (i, 0)),
        ],
        out_specs=pl.BlockSpec((bb, D_out), lambda i: (i, 0)),
        compiler_params=pltpu.CompilerParams(dimension_semantics=("parallel",)),
    )(wb, x)


def init_params(key):
    """Deterministic init mimicking PyTorch nn.Linear (uniform(-1/sqrt(in), 1/sqrt(in)))."""
    params = []
    for (din, dout) in LAYER_DIMS:
        key, kw, kb = jax.random.split(key, 3)
        bound = 1.0 / (din ** 0.5)
        w = jax.random.uniform(kw, (din, dout), jnp.float32, -bound, bound)
        b = jax.random.uniform(kb, (1, dout), jnp.float32, -bound, bound)
        params.append((w, b))
    return params


def mlp_reference(x, params):
    """Layer-by-layer f32 reference (matches PyTorch fp32 forward semantics)."""
    h = x
    for w, b in params:
        h = jnp.dot(h, w, precision=jax.lax.Precision.HIGHEST) + b
    return h


if __name__ == "__main__":
    key = jax.random.PRNGKey(0)
    key, kx = jax.random.split(key)
    B = 8
    x = jax.random.normal(kx, (B, D_in), jnp.float32)
    params = init_params(key)

    fwd = jax.jit(mlp_forward)
    out = jax.block_until_ready(fwd(x, params))

    ref = mlp_reference(x, params)
    assert out.shape == (B, D_out)
    # Slightly loosened tolerance: the fold reassociates the 9 matmuls (different f32
    # rounding order than the layer-by-layer reference).
    assert jnp.allclose(out, ref, atol=5e-4, rtol=5e-4), "mismatch vs JAX reference"

    print("KERNEL_OK")
</pallas_src>

<mosaic_0001>
module attributes {stable_mosaic.version = 11 : i64} {
  func.func @affine_kernel(%arg0: i32, %arg1: memref<32x25xf32, #tpu.memory_space<vmem>>, %arg2: memref<8x25xf32, #tpu.memory_space<vmem>>, %arg3: memref<8x25xf32, #tpu.memory_space<vmem>>) attributes {dimension_semantics = [#tpu.dimension_semantics<parallel>], iteration_bounds = array<i64: 1>, scalar_prefetch = 0 : i64, scratch_operands = 0 : i64, tpu.core_type = #tpu.core_type<tc>, window_params = [{pipeline_mode = #tpu.pipeline_mode<synchronous>, transform_indices = @transform_0, window_bounds = array<i64: 32, 25>}, {transform_indices = @transform_1, window_bounds = array<i64: 8, 25>}, {transform_indices = @transform_2, window_bounds = array<i64: 8, 25>}]} {
    %c0 = arith.constant 0 : index
    %c0_0 = arith.constant 0 : index
    %0 = vector.load %arg1[%c0, %c0_0] : memref<32x25xf32, #tpu.memory_space<vmem>>, vector<25x25xf32>
    %c25 = arith.constant 25 : index
    %c0_1 = arith.constant 0 : index
    %1 = vector.load %arg1[%c25, %c0_1] : memref<32x25xf32, #tpu.memory_space<vmem>>, vector<1x25xf32>
    %c0_2 = arith.constant 0 : index
    %c0_3 = arith.constant 0 : index
    %2 = vector.load %arg2[%c0_2, %c0_3] : memref<8x25xf32, #tpu.memory_space<vmem>>, vector<8x25xf32>
    %cst = arith.constant dense<0.000000e+00> : vector<8x25xf32>
    %3 = tpu.matmul %2, %0, %cst {dimension_numbers = #tpu.dot_dimension_numbers<[1], [0], [0], [1], [0, 0, 1, 1], [], []>} : vector<8x25xf32>, vector<25x25xf32>, vector<8x25xf32> -> vector<8x25xf32>
    %4 = vector.broadcast %1 : vector<1x25xf32> to vector<8x25xf32>
    %5 = arith.addf %3, %4 : vector<8x25xf32>
    %c0_4 = arith.constant 0 : index
    %c0_5 = arith.constant 0 : index
    %6 = vector.load %arg3[%c0_4, %c0_5] : memref<8x25xf32, #tpu.memory_space<vmem>>, vector<8x25xf32>
    tpu.vector_store %arg3[%c0_4, %c0_5], %5 {strides = array<i32>} : memref<8x25xf32, #tpu.memory_space<vmem>>, vector<8x25xf32>,
    return
  }
  func.func @transform_0(%arg0: i32) -> (i32, i32) {
    %c0_i32 = arith.constant 0 : i32
    %c0_i32_0 = arith.constant 0 : i32
    %c0_i32_1 = arith.constant 0 : i32
    return %c0_i32, %c0_i32_0 : i32, i32
  }
  func.func @transform_1(%arg0: i32) -> (i32, i32) {
    %c0_i32 = arith.constant 0 : i32
    %c0_i32_0 = arith.constant 0 : i32
    return %arg0, %c0_i32 : i32, i32
  }
  func.func @transform_2(%arg0: i32) -> (i32, i32) {
    %c0_i32 = arith.constant 0 : i32
    %c0_i32_0 = arith.constant 0 : i32
    return %arg0, %c0_i32 : i32, i32
  }
}

</mosaic_0001>

<llo_original>
// kernel: mlp_forward.1
$region0: #{mlp_forward.1}
  #allocation0 [shape = 'u32[]', space=smem, size = 0x4, offset = 0x4, fixed_abs, tag = 'smem constant byte address 0x4 - core index']
  #allocation1 [shape = 'u32[144,128]{1,0:T(1,128)}', space=vmem, size = 0x12000, scoped, tag = 'internal scratch']
  %s0 = inlined_call_operand.vmem [shape: f32[32,25], index: 0, kind: input, shape index: {}]
  %s1 = inlined_call_operand.vmem [shape: f32[8,25], index: 1, kind: input, shape index: {}]
  %s2 = inlined_call_operand.hbm [shape: f32[8,25], index: 2, kind: output, shape index: {}]
  %s3 = sld [smem:[#allocation0]]
  $region18: #{mlp_forward.1} parent=0
    _
  %s5 = ssub.s32 1, %s3
  %s6 = scalar_select 0, %s5, %s3
  $region1: #{mlp_forward.1} parent=0
    #allocation2 [shape = 'u8[4096]{0}', space=vmem, size = 0x1000, scoped, tag = 'output window, operand 0, single buffered']
    #allocation3 [shape = 's32[1]{0}', space=sflag, size = 0x4, scoped, tag = 'scoped memory for mlp_forward.1']
    %7 = vsyncpa [#allocation3], 0
    // Predicated region
    $region2: #{mlp_forward.1} parent=1 // pred_check
      _
    $region3: #{mlp_forward.1} parent=1 // pred_check_branch
      %9 = sbr.rel (0) target = $region5
    $region4: #{mlp_forward.1} parent=1 // pred_region
      _
    $region5: #{mlp_forward.1} parent=1 // pred_fallthru
      _
    // Predicated region
    $region6: #{mlp_forward.1} parent=1 // pred_check
      _
    $region7: #{mlp_forward.1} parent=1 // pred_check_branch
      %11 = sbr.rel (0) target = $region9
    $region8: #{mlp_forward.1} parent=1 // pred_region
      _
    $region9: #{mlp_forward.1} parent=1 // pred_fallthru
      _
    %v12 = vld [vmem:[%s0] sm:$0xff]
    %v13 = vld [vmem:[%s0 + $0x8] sm:$0xff]
    %v14 = vld [vmem:[%s0 + $0x10] sm:$0xff]
    %v15 = vld [vmem:[%s0 + $0x18] sm:$0x1]
    %v16 = vld [vmem:[%s0 + $0x19] sm:$0x1]
    %v17 = vld [vmem:[%s1] sm:$0xff]
    %v18 = vlaneseq
    %v19 = vshrl.u32 %v18, 7
    %v20 = vsub.s32 0, %v19
    %v21 = vrot.slane %v16, %v20
    %vm22 = vcmask 203776
    %v24 = vsel %vm22, %v17, 0
    %vm26 = vcmask 1040384
    %v28 = vsel %vm26, %v15, 0
    %30 = vmatprep.subr.mxu0 0.0
    %31 = vmatpush1.msra.mxu0 0.0
    %32 = vmatprep.subr.mxu0 0.0
    %33 = vmatpush1.msra.mxu0 0.0
    %34 = vmatprep.subr.mxu0 0.0
    %35 = vmatpush1.msra.mxu0 0.0
    %36 = vmatprep.subr.mxu0 0.0
    %37 = vmatpush1.msra.mxu0 0.0
    %38 = vmatprep.subr.mxu0 0.0
    %39 = vmatpush1.msra.mxu0 0.0
    %40 = vmatprep.subr.mxu0 0.0
    %41 = vmatpush1.msra.mxu0 0.0
    %42 = vmatprep.subr.mxu0 0.0
    %43 = vmatpush1.msra.mxu0 0.0
    %44 = vmatprep.subr.mxu0 0.0
    %45 = vmatpush1.msra.mxu0 0.0
    %46 = vmatprep.subr.mxu0 0.0
    %47 = vmatpush1.msra.mxu0 0.0
    %48 = vmatprep.subr.mxu0 0.0
    %49 = vmatpush1.msra.mxu0 0.0
    %50 = vmatprep.subr.mxu0 0.0
    %51 = vmatpush1.msra.mxu0 0.0
    %52 = vmatprep.subr.mxu0 0.0
    %53 = vmatpush1.msra.mxu0 0.0
    %54 = vmatprep.subr.mxu0 0.0
    %55 = vmatpush1.msra.mxu0 %v28
    %56 = vmatprep.subr.mxu0 0.0
    %57 = vmatpush1.msra.mxu0 %v14
    %58 = vmatprep.subr.mxu0 0.0
    %59 = vmatpush1.msra.mxu0 %v13
    %60 = vmatprep.subr.mxu0 0.0
    %61 = vmatpush1.msra.mxu0 %v12
    %62 = vmatprep.subr.mxu0 0.0
    %63 = vmatpush2.msra.mxu0 0.0
    %64 = vmatprep.subr.mxu0 0.0
    %65 = vmatpush2.msra.mxu0 0.0
    %66 = vmatprep.subr.mxu0 0.0
    %67 = vmatpush2.msra.mxu0 0.0
    %68 = vmatprep.subr.mxu0 0.0
    %69 = vmatpush2.msra.mxu0 0.0
    %70 = vmatprep.subr.mxu0 0.0
    %71 = vmatpush2.msra.mxu0 0.0
    %72 = vmatprep.subr.mxu0 0.0
    %73 = vmatpush2.msra.mxu0 0.0
    %74 = vmatprep.subr.mxu0 0.0
    %75 = vmatpush2.msra.mxu0 0.0
    %76 = vmatprep.subr.mxu0 0.0
    %77 = vmatpush2.msra.mxu0 0.0
    %78 = vmatprep.subr.mxu0 0.0
    %79 = vmatpush2.msra.mxu0 0.0
    %80 = vmatprep.subr.mxu0 0.0
    %81 = vmatpush2.msra.mxu0 0.0
    %82 = vmatprep.subr.mxu0 0.0
    %83 = vmatpush2.msra.mxu0 0.0
    %84 = vmatprep.subr.mxu0 0.0
    %85 = vmatpush2.msra.mxu0 0.0
    %86 = vmatprep.subr.mxu0 0.0
    %87 = vmatpush2.msra.mxu0 0.0
    %88 = vmatprep.subr.mxu0 0.0
    %89 = vmatpush2.msra.mxu0 0.0
    %90 = vmatprep.subr.mxu0 0.0
    %91 = vmatpush2.msra.mxu0 0.0
    %92 = vmatprep.subr.mxu0 0.0
    %93 = vmatpush2.msra.mxu0 0.0
    %94 = vmatprep.mubr.f32.mxu0 0.0
    %95 = vmatmul.mubr.f32.gmra.mxu0 %v24
    %v96 = vpop.f32.mrf.mxu0
    %v97 = vadd.f32 %v21, %v96
    %v98 = vpop.f32.mrf.mxu0
    %99 = vdwg.mxu0
    %100 = vst.msk [vmem:[#allocation2] sm:$0xff] %vm22, %v97
    // Predicated region
    $region10: #{mlp_forward.1} parent=1 // pred_check
      _
    $region11: #{mlp_forward.1} parent=1 // pred_check_branch
      %102 = sbr.rel (0) target = $region13
    $region12: #{mlp_forward.1} parent=1 // pred_region
      %s104 = ssub.s32 128, 128
      %105 = vsyncadd [#allocation3], %s104
      %s107 = sshll.u32 [#allocation2], 4
      %s108 = int_to_ptr.vmem [resolvable:$true] %s107
      %110 = dma.vmem_to_hbm [thread:$0]  %s108, 128, %s2, [#allocation3]
    $region13: #{mlp_forward.1} parent=1 // pred_fallthru
      _
    // Predicated region
    $region14: #{mlp_forward.1} parent=1 // pred_check
      _
    $region15: #{mlp_forward.1} parent=1 // pred_check_branch
      %112 = sbr.rel (0) target = $region17
    $region16: #{mlp_forward.1} parent=1 // pred_region
      %113 = dma.done [#allocation3], 128
    $region17: #{mlp_forward.1} parent=1 // pred_fallthru
      _
    %114 = vsyncpa [#allocation3], 1

</llo_original>
